<compile_context>
chip_gen: v7x
topology: tpu7x:2x2x1
jax: 0.10.0
libtpu: 0.0.40
codegen_flags: <defaults>
</compile_context>

<pallas_src>
import functools

import jax
import jax.numpy as jnp
from jax.experimental import pallas as pl
from jax.experimental.pallas import tpu as pltpu


# ----------------------------- helpers ------------------------------------- #

def _round_up(x, m):
    return ((x + m - 1) // m) * m


def _dot_nt(a, b):
    """a @ b.T contracting the last dims (no explicit transpose), f32 accumulation."""
    return jax.lax.dot_general(
        a, b, (((1,), (1,)), ((), ())), preferred_element_type=jnp.float32)


def _dot_tn(a, b):
    """a.T @ b contracting axis 0 of both (no explicit transpose), f32 accumulation."""
    return jax.lax.dot_general(
        a, b, (((0,), (0,)), ((), ())), preferred_element_type=jnp.float32)


def _grid_params():
    return pltpu.CompilerParams(dimension_semantics=("arbitrary",),
                                vmem_limit_bytes=64 * 1024 * 1024)


def _sinkhorn_iterate(qt, *, n_iters, n_rows, n_cols):
    """Sinkhorn iterations on Qt (N_pad, P_pad), zero outside the valid region.

    Mirrors the torch loop on Q = Qt.T:
      Q /= sum(Q); { normalize(dim=1); /K; normalize(dim=0); /B } x n_iters; Q *= B
    Constant divisors are folded into EUP reciprocals; the final /B * B pair cancels
    and is dropped.  Padded (zero) rows/cols stay exactly zero through every step.
    """
    ssum = jnp.sum(jnp.sum(qt, axis=1, keepdims=True), axis=0, keepdims=True)
    qt = qt * pl.reciprocal(jnp.maximum(ssum, 1e-30), approx=True)
    for it in range(n_iters):
        col = jnp.sum(qt, axis=0, keepdims=True)                      # (1, P_pad)
        qt = qt * pl.reciprocal(jnp.maximum(col * n_cols, 1e-12), approx=True)
        row = jnp.sum(qt, axis=1, keepdims=True)                      # (N_pad, 1)
        if it + 1 < n_iters:
            qt = qt * pl.reciprocal(jnp.maximum(row * n_rows, 1e-12), approx=True)
        else:  # last iteration: /B cancels the trailing *B
            qt = qt * pl.reciprocal(jnp.maximum(row, 1e-12), approx=True)
    return qt
# TODO(synk): the torch inf-guard branch (sum_Q == inf -> self.ws(...)) is not
# reproduced; it is unreachable for unit-norm inputs at this epsilon (and self.ws
# is undefined in the reference module).


# ----------------------------- kernels ------------------------------------- #

def sinkhorn_update_mask_kernel(f_ref, p_ref, mask_ref, um_ref, *,
                                epsilon, n_iters, n_rows, n_cols, tile_n):
    """Streams feature row-tiles; final step runs sinkhorn + mask*Q on resident out."""
    i = pl.program_id(0)
    out = _dot_nt(f_ref[...], p_ref[...])                             # (TN, P_pad) f32
    rid = tile_n * i + jax.lax.broadcasted_iota(jnp.int32, out.shape, 0)
    cid = jax.lax.broadcasted_iota(jnp.int32, out.shape, 1)
    valid = jnp.logical_and(rid < n_rows, cid < n_cols).astype(jnp.float32)
    start = pl.multiple_of(i * tile_n, tile_n)
    um_ref[pl.ds(start, tile_n), :] = jnp.exp(out * (1.0 / epsilon)) * valid

    @pl.when(i == pl.num_programs(0) - 1)
    def _():
        qt = _sinkhorn_iterate(um_ref[...], n_iters=n_iters,
                               n_rows=n_rows, n_cols=n_cols)
        um_ref[...] = mask_ref[...] * qt                              # update_mask


def update_protos_kernel(um_ref, f_ref, p_ref, o_ref, *, proto_m):
    """um.T @ features over row-tiles, fused with proto EMA + L2 normalization."""
    i = pl.program_id(0)

    @pl.when(i == 0)
    def _():
        o_ref[...] = jnp.zeros_like(o_ref)

    o_ref[...] += _dot_tn(um_ref[...], f_ref[...])

    @pl.when(i == pl.num_programs(0) - 1)
    def _():
        p_new = proto_m * p_ref[...] + (1.0 - proto_m) * o_ref[...]
        o_ref[...] = p_new * jax.lax.rsqrt(
            jnp.maximum(jnp.sum(p_new * p_new, axis=1, keepdims=True), 1e-24))


def mle_pcon_kernel(f_ref, p_ref, wpre_ref, *refs,
                    epsilon, n_iters, temp, n_rows, n_cols, tile_n, with_pcon):
    """Second sinkhorn + MLE loss (+ optional proto_contra) fused in one pass."""
    if with_pcon:
        posw_ref, negm_ref, mle_ref, pcon_ref, out_sc = refs
    else:
        (mle_ref, out_sc) = refs
        posw_ref = negm_ref = pcon_ref = None

    i = pl.program_id(0)
    start = pl.multiple_of(i * tile_n, tile_n)
    out_sc[pl.ds(start, tile_n), :] = _dot_nt(f_ref[...], p_ref[...])

    @pl.when(i == pl.num_programs(0) - 1)
    def _():
        out = out_sc[...]                                             # (N_pad, P_pad)
        rid = jax.lax.broadcasted_iota(jnp.int32, out.shape, 0)
        cid = jax.lax.broadcasted_iota(jnp.int32, out.shape, 1)
        cvalid = cid < n_cols
        valid = jnp.logical_and(rid < n_rows, cvalid).astype(jnp.float32)

        qt = jnp.exp(out * (1.0 / epsilon)) * valid
        q2 = _sinkhorn_iterate(qt, n_iters=n_iters, n_rows=n_rows, n_cols=n_cols)

        logits = out * (1.0 / temp)
        w = wpre_ref[...] * q2                                        # >= 0, zero in pad
        wn = w * pl.reciprocal(
            jnp.maximum(jnp.sum(w, axis=1, keepdims=True), 1e-12), approx=True)
        pos = jnp.sum(wn * logits, axis=1, keepdims=True)             # (N_pad, 1)

        # max-shifted logsumexp over the valid proto columns only
        neg_max = jnp.max(jnp.where(cvalid, logits, -1e30), axis=1, keepdims=True)
        zsum = jnp.sum(jnp.exp(logits - neg_max) * cvalid.astype(jnp.float32),
                       axis=1, keepdims=True)
        neg = neg_max + jnp.log(jnp.maximum(zsum, 1e-30))

        rv = jax.lax.broadcasted_iota(jnp.int32, pos.shape, 0) < n_rows
        term = jnp.where(rv, pos - neg, 0.0)
        # torch's pos(N,) - neg(N,1) broadcast mean == mean(pos) - mean(neg)
        mle_ref[...] = -jnp.sum(term, axis=0, keepdims=True) * (1.0 / n_rows)

        if with_pcon:
            p = p_ref[...].astype(jnp.float32)
            pn = p * jax.lax.rsqrt(
                jnp.maximum(jnp.sum(p * p, axis=1, keepdims=True), 1e-24))
            pnb = pn.astype(jnp.bfloat16)
            adc = _dot_nt(pnb, pnb) * 2.0                             # matmul / 0.5
            plog = adc - jnp.max(adc, axis=1, keepdims=True)
            ppos = jnp.sum(posw_ref[...] * plog, axis=1, keepdims=True)
            pneg = jnp.log(jnp.maximum(
                jnp.sum(negm_ref[...] * jnp.exp(plog), axis=1, keepdims=True), 1e-30))
            prv = jax.lax.broadcasted_iota(jnp.int32, ppos.shape, 0) < n_cols
            pterm = jnp.where(prv, ppos - pneg, 0.0)
            pcon_ref[...] = -jnp.sum(pterm, axis=0, keepdims=True) * (1.0 / n_cols)


# --------------------------- pallas wrappers -------------------------------- #

def sinkhorn_update_mask(f_bf, p_bf, mask_pad, *, epsilon, n_iters,
                         n_rows, n_cols, tile_n):
    n_pad, d_pad = f_bf.shape
    p_pad = p_bf.shape[0]
    return pl.pallas_call(
        functools.partial(sinkhorn_update_mask_kernel, epsilon=epsilon,
                          n_iters=n_iters, n_rows=n_rows, n_cols=n_cols,
                          tile_n=tile_n),
        grid=(n_pad // tile_n,),
        in_specs=[pl.BlockSpec((tile_n, d_pad), lambda i: (i, 0)),
                  pl.BlockSpec((p_pad, d_pad), lambda i: (0, 0)),
                  pl.BlockSpec((n_pad, p_pad), lambda i: (0, 0))],
        out_specs=pl.BlockSpec((n_pad, p_pad), lambda i: (0, 0)),
        out_shape=jax.ShapeDtypeStruct((n_pad, p_pad), jnp.float32),
        compiler_params=_grid_params(),
    )(f_bf, p_bf, mask_pad)


def update_protos(um_bf, f_bf, protos_pad, *, proto_m, tile_n):
    n_pad, p_pad = um_bf.shape
    d_pad = f_bf.shape[1]
    return pl.pallas_call(
        functools.partial(update_protos_kernel, proto_m=proto_m),
        grid=(n_pad // tile_n,),
        in_specs=[pl.BlockSpec((tile_n, p_pad), lambda i: (i, 0)),
                  pl.BlockSpec((tile_n, d_pad), lambda i: (i, 0)),
                  pl.BlockSpec((p_pad, d_pad), lambda i: (0, 0))],
        out_specs=pl.BlockSpec((p_pad, d_pad), lambda i: (0, 0)),
        out_shape=jax.ShapeDtypeStruct((p_pad, d_pad), jnp.float32),
        compiler_params=_grid_params(),
    )(um_bf, f_bf, protos_pad)


def mle_pcon_fused(f_bf, p_new_bf, wpre_pad, posw, negm, *, epsilon, n_iters,
                   temp, n_rows, n_cols, tile_n, with_pcon):
    n_pad, d_pad = f_bf.shape
    p_pad = p_new_bf.shape[0]
    in_specs = [pl.BlockSpec((tile_n, d_pad), lambda i: (i, 0)),
                pl.BlockSpec((p_pad, d_pad), lambda i: (0, 0)),
                pl.BlockSpec((n_pad, p_pad), lambda i: (0, 0))]
    args = [f_bf, p_new_bf, wpre_pad]
    if with_pcon:
        in_specs += [pl.BlockSpec((p_pad, p_pad), lambda i: (0, 0)),
                     pl.BlockSpec((p_pad, p_pad), lambda i: (0, 0))]
        args += [posw, negm]
        out_specs = (pl.BlockSpec((1, 1), lambda i: (0, 0)),
                     pl.BlockSpec((1, 1), lambda i: (0, 0)))
        out_shape = (jax.ShapeDtypeStruct((1, 1), jnp.float32),
                     jax.ShapeDtypeStruct((1, 1), jnp.float32))
    else:
        out_specs = pl.BlockSpec((1, 1), lambda i: (0, 0))
        out_shape = jax.ShapeDtypeStruct((1, 1), jnp.float32)

    res = pl.pallas_call(
        functools.partial(mle_pcon_kernel, epsilon=epsilon, n_iters=n_iters,
                          temp=temp, n_rows=n_rows, n_cols=n_cols, tile_n=tile_n,
                          with_pcon=with_pcon),
        grid=(n_pad // tile_n,),
        in_specs=in_specs,
        out_specs=out_specs,
        out_shape=out_shape,
        scratch_shapes=[pltpu.VMEM((n_pad, p_pad), jnp.float32)],
        compiler_params=_grid_params(),
    )(*args)
    if with_pcon:
        return res[0][0, 0], res[1][0, 0]
    return res[0, 0], None


# ------------------------------ PALM forward -------------------------------- #

def palm_forward(features, targets, protos, proto_class_counts, *,
                 nviews=1, num_classes=2, proto_m=0.99, temp=0.1,
                 lambda_pcon=1.0, k=5, epsilon=0.05, sinkhorn_iters=3,
                 row_tile=512):
    """Returns (loss, loss_dict, new_protos, new_proto_class_counts)."""
    features = features.astype(jnp.float32)
    n, d = features.shape
    n_protos = protos.shape[0]
    cache_size = n_protos // num_classes
    k = min(k, cache_size)

    # padded layout: protos lane-dense (x128), batch rows tiled (x8 / row_tile)
    p_pad = _round_up(n_protos, 128)
    d_pad = _round_up(d, 128)
    if n <= row_tile:
        tile_n = _round_up(n, 8)
        n_pad = tile_n
    else:
        tile_n = row_tile
        n_pad = _round_up(n, tile_n)

    f_pad = jnp.pad(features, ((0, n_pad - n), (0, d_pad - d)))
    f_bf = f_pad.astype(jnp.bfloat16)
    protos_pad = jnp.pad(protos.astype(jnp.float32),
                         ((0, p_pad - n_protos), (0, d_pad - d)))

    # contrast_labels = arange(C).repeat(cache_size) -> proto i has class (i % C)
    proto_labels = jnp.arange(n_protos, dtype=jnp.int32) % num_classes
    anchor_labels = jnp.tile(targets.astype(jnp.int32), nviews)                 # (N,)
    mask = (anchor_labels[:, None] == proto_labels[None, :]).astype(jnp.float32)
    mask_pad = jnp.pad(mask, ((0, n_pad - n), (0, p_pad - n_protos)))

    # ---------------- mle_loss ----------------
    # 1st sinkhorn fused with mask * Q  ->  update_mask (padded, pre-top-k)
    um_raw_pad = sinkhorn_update_mask(f_bf, protos_pad.astype(jnp.bfloat16),
                                      mask_pad, epsilon=epsilon,
                                      n_iters=sinkhorn_iters, n_rows=n,
                                      n_cols=n_protos, tile_n=tile_n)
    um_raw = um_raw_pad[:n, :n_protos]

    # top-k + double L1 normalization (small glue, plain JAX)
    if k > 0:
        _, topk_idx = jax.lax.top_k(um_raw, k)
        topk_mask = (jax.nn.one_hot(topk_idx, n_protos, dtype=jnp.float32)
                     .sum(axis=1) > 0).astype(jnp.float32)
        um = topk_mask * um_raw
    else:
        um = um_raw
    um = um / jnp.maximum(jnp.sum(jnp.abs(um), axis=1, keepdims=True), 1e-12)
    um = um / jnp.maximum(jnp.sum(jnp.abs(um), axis=0, keepdims=True), 1e-12)
    um_pad = jnp.pad(um, ((0, n_pad - n), (0, p_pad - n_protos)))

    # prototype update: um.T @ features fused with EMA + L2 normalize in-kernel
    protos_new_pad = update_protos(um_pad.astype(jnp.bfloat16), f_bf, protos_pad,
                                   proto_m=proto_m, tile_n=tile_n)
    protos_new = protos_new_pad[:n_protos, :d]

    # tiny (P, num_classes) matmul stays in plain JAX (last dim << 128 lanes)
    # TODO(synk): as in the reference module, this only type-checks when nviews == 1.
    onehot_t = jax.nn.one_hot(targets, num_classes, dtype=jnp.float32)
    proto_class_counts = proto_class_counts + jnp.einsum('np,nc->pc', um, onehot_t)

    # 2nd sinkhorn + MLE loss (+ proto_contra) fused: single features @ protos_new.T
    if k > 0:
        _, topk_idx2 = jax.lax.top_k(um, k)
        topk_mask2 = (jax.nn.one_hot(topk_idx2, n_protos, dtype=jnp.float32)
                      .sum(axis=1) > 0).astype(jnp.float32)
        wpre = topk_mask2 * mask
    else:
        wpre = mask
    wpre_pad = jnp.pad(wpre, ((0, n_pad - n), (0, p_pad - n_protos)))

    with_pcon = lambda_pcon > 0
    if with_pcon:
        # static proto_contra masks (depend only on n_protos / num_classes / padding)
        ids = jnp.arange(p_pad, dtype=jnp.int32)
        valid = ids < n_protos
        lbl = ids % num_classes
        same = (lbl[:, None] == lbl[None, :]) & valid[:, None] & valid[None, :]
        not_diag = ids[:, None] != ids[None, :]
        pos_m = (same & not_diag).astype(jnp.float32)
        posw = pos_m / jnp.maximum(jnp.sum(pos_m, axis=1, keepdims=True), 1e-12)
        negm = (not_diag & valid[:, None] & valid[None, :]).astype(jnp.float32)
    else:
        posw = negm = None

    g_con, g_dis_raw = mle_pcon_fused(
        f_bf, protos_new_pad.astype(jnp.bfloat16), wpre_pad, posw, negm,
        epsilon=epsilon, n_iters=sinkhorn_iters, temp=temp,
        n_rows=n, n_cols=n_protos, tile_n=tile_n, with_pcon=with_pcon)

    loss = g_con
    loss_dict = {'mle': g_con}
    if with_pcon:
        g_dis = lambda_pcon * g_dis_raw
        loss = loss + g_dis
        loss_dict['proto_contra'] = g_dis

    return loss, loss_dict, protos_new, proto_class_counts


# ---------------------------------- main ------------------------------------ #

if __name__ == "__main__":
    num_classes = 2
    n_protos = 8          # cache_size = 4, k = min(5, 4) = 4
    feat_dim = 128
    batch = 8
    nviews = 1

    key = jax.random.PRNGKey(0)
    k_feat, k_tgt, k_proto = jax.random.split(key, 3)

    features = jax.random.normal(k_feat, (batch * nviews, feat_dim), dtype=jnp.float32)
    features = features / jnp.linalg.norm(features, axis=1, keepdims=True)
    targets = jax.random.randint(k_tgt, (batch,), 0, num_classes, dtype=jnp.int32)

    protos = jax.random.uniform(k_proto, (n_protos, feat_dim), dtype=jnp.float32)
    protos = protos / jnp.linalg.norm(protos, axis=1, keepdims=True)
    proto_class_counts = jnp.zeros((n_protos, num_classes), dtype=jnp.float32)

    loss, loss_dict, protos_new, counts_new = palm_forward(
        features, targets, protos, proto_class_counts,
        nviews=nviews, num_classes=num_classes, proto_m=0.99, temp=0.1,
        lambda_pcon=1.0, k=5, epsilon=0.05)
    jax.block_until_ready(loss)
    jax.block_until_ready(protos_new)
    jax.block_until_ready(counts_new)

    # second run exercising the multi-step row grid (row padding + pipelining path)
    batch2 = 44
    kf2, kt2 = jax.random.split(jax.random.PRNGKey(0), 2)
    f2 = jax.random.normal(kf2, (batch2, feat_dim), dtype=jnp.float32)
    f2 = f2 / jnp.linalg.norm(f2, axis=1, keepdims=True)
    t2 = jax.random.randint(kt2, (batch2,), 0, num_classes, dtype=jnp.int32)
    loss2, _, p2, c2 = palm_forward(
        f2, t2, protos, proto_class_counts,
        nviews=1, num_classes=num_classes, proto_m=0.99, temp=0.1,
        lambda_pcon=1.0, k=5, epsilon=0.05, row_tile=16)
    jax.block_until_ready(loss2)
    jax.block_until_ready(p2)
    jax.block_until_ready(c2)

    print("KERNEL_OK")
</pallas_src>

<mosaic_0001>
module attributes {stable_mosaic.version = 11 : i64} {
  func.func @sinkhorn_update_mask_kernel(%arg0: i32, %arg1: memref<8x128xbf16, #tpu.memory_space<vmem>>, %arg2: memref<128x128xbf16, #tpu.memory_space<vmem>>, %arg3: memref<8x128xf32, #tpu.memory_space<vmem>>, %arg4: memref<8x128xf32, #tpu.memory_space<vmem>>) attributes {dimension_semantics = [#tpu.dimension_semantics<arbitrary>], iteration_bounds = array<i64: 1>, scalar_prefetch = 0 : i64, scratch_operands = 0 : i64, tpu.core_type = #tpu.core_type<tc>, window_params = [{transform_indices = @transform_0, window_bounds = array<i64: 8, 128>}, {pipeline_mode = #tpu.pipeline_mode<synchronous>, transform_indices = @transform_1, window_bounds = array<i64: 128, 128>}, {pipeline_mode = #tpu.pipeline_mode<synchronous>, transform_indices = @transform_2, window_bounds = array<i64: 8, 128>}, {pipeline_mode = #tpu.pipeline_mode<synchronous>, transform_indices = @transform_3, window_bounds = array<i64: 8, 128>}]} {
    %c0 = arith.constant 0 : index
    %c0_0 = arith.constant 0 : index
    %0 = vector.load %arg1[%c0, %c0_0] : memref<8x128xbf16, #tpu.memory_space<vmem>>, vector<8x128xbf16>
    %c0_1 = arith.constant 0 : index
    %c0_2 = arith.constant 0 : index
    %1 = vector.load %arg2[%c0_1, %c0_2] : memref<128x128xbf16, #tpu.memory_space<vmem>>, vector<128x128xbf16>
    %cst = arith.constant dense<0.000000e+00> : vector<8x128xf32>
    %2 = tpu.matmul %0, %1, %cst {dimension_numbers = #tpu.dot_dimension_numbers<[1], [1], [0], [0], [0, 0, 1, 0], [], []>} : vector<8x128xbf16>, vector<128x128xbf16>, vector<8x128xf32> -> vector<8x128xf32>
    %c8_i32 = arith.constant 8 : i32
    %3 = arith.muli %c8_i32, %arg0 : i32
    %4 = tpu.iota {dimensions = array<i32: 0>} : vector<8x128xi32>
    %5 = vector.broadcast %3 : i32 to vector<8x128xi32>
    %6 = arith.addi %5, %4 : vector<8x128xi32>
    %7 = tpu.iota {dimensions = array<i32: 1>} : vector<8x128xi32>
    %c8_i32_3 = arith.constant 8 : i32
    %8 = vector.broadcast %c8_i32_3 : i32 to vector<8x128xi32>
    %9 = arith.cmpi slt, %6, %8 : vector<8x128xi32>
    %c8_i32_4 = arith.constant 8 : i32
    %10 = vector.broadcast %c8_i32_4 : i32 to vector<8x128xi32>
    %11 = arith.cmpi slt, %7, %10 : vector<8x128xi32>
    %12 = arith.andi %9, %11 : vector<8x128xi1>
    %13 = arith.extui %12 : vector<8x128xi1> to vector<8x128xi32>
    %14 = arith.sitofp %13 : vector<8x128xi32> to vector<8x128xf32>
    %c8_i32_5 = arith.constant 8 : i32
    %15 = arith.muli %arg0, %c8_i32_5 : i32
    %16 = tpu.assume_multiple %15, 8 : i32
    %cst_6 = arith.constant 2.000000e+01 : f32
    %17 = vector.broadcast %cst_6 : f32 to vector<8x128xf32>
    %18 = arith.mulf %2, %17 : vector<8x128xf32>
    %19 = math.exp %18 : vector<8x128xf32>
    %20 = arith.mulf %19, %14 : vector<8x128xf32>
    %21 = arith.index_cast %16 : i32 to index
    %c0_7 = arith.constant 0 : index
    %22 = vector.load %arg4[%21, %c0_7] : memref<8x128xf32, #tpu.memory_space<vmem>>, vector<8x128xf32>
    tpu.vector_store %arg4[%21, %c0_7], %20 {strides = array<i32>} : memref<8x128xf32, #tpu.memory_space<vmem>>, vector<8x128xf32>,
    %c0_i32 = arith.constant 0 : i32
    %23 = arith.cmpi eq, %arg0, %c0_i32 : i32
    %24 = arith.extui %23 : i1 to i32
    %c0_i32_8 = arith.constant 0 : i32
    %25 = arith.cmpi ne, %24, %c0_i32_8 : i32
    scf.if %25 {
      %c0_9 = arith.constant 0 : index
      %c0_10 = arith.constant 0 : index
      %26 = vector.load %arg4[%c0_9, %c0_10] : memref<8x128xf32, #tpu.memory_space<vmem>>, vector<8x128xf32>
      %cst_11 = arith.constant dense<0.000000e+00> : vector<8xf32>
      %27 = vector.multi_reduction <add>, %26, %cst_11 [1] : vector<8x128xf32> to vector<8xf32>
      %28 = vector.shape_cast %27 : vector<8xf32> to vector<8x1xf32>
      %cst_12 = arith.constant dense<0.000000e+00> : vector<1xf32>
      %29 = vector.multi_reduction <add>, %28, %cst_12 [0] : vector<8x1xf32> to vector<1xf32>
      %30 = vector.shape_cast %29 : vector<1xf32> to vector<1x1xf32>
      %cst_13 = arith.constant 1.000000e-30 : f32
      %31 = vector.broadcast %cst_13 : f32 to vector<1x1xf32>
      %32 = arith.maximumf %30, %31 : vector<1x1xf32>
      %33 = tpu.reciprocal %32 {approx = true} : vector<1x1xf32> -> vector<1x1xf32>
      %34 = vector.broadcast %33 : vector<1x1xf32> to vector<8x128xf32>
      %35 = arith.mulf %26, %34 : vector<8x128xf32>
      %cst_14 = arith.constant dense<0.000000e+00> : vector<128xf32>
      %36 = vector.multi_reduction <add>, %35, %cst_14 [0] : vector<8x128xf32> to vector<128xf32>
      %37 = vector.shape_cast %36 : vector<128xf32> to vector<1x128xf32>
      %cst_15 = arith.constant 8.000000e+00 : f32
      %38 = vector.broadcast %cst_15 : f32 to vector<1x128xf32>
      %39 = arith.mulf %37, %38 : vector<1x128xf32>
      %cst_16 = arith.constant 9.99999996E-13 : f32
      %40 = vector.broadcast %cst_16 : f32 to vector<1x128xf32>
      %41 = arith.maximumf %39, %40 : vector<1x128xf32>
      %42 = tpu.reciprocal %41 {approx = true} : vector<1x128xf32> -> vector<1x128xf32>
      %43 = vector.broadcast %42 : vector<1x128xf32> to vector<8x128xf32>
      %44 = arith.mulf %35, %43 : vector<8x128xf32>
      %cst_17 = arith.constant dense<0.000000e+00> : vector<8xf32>
      %45 = vector.multi_reduction <add>, %44, %cst_17 [1] : vector<8x128xf32> to vector<8xf32>
      %46 = vector.shape_cast %45 : vector<8xf32> to vector<8x1xf32>
      %cst_18 = arith.constant 8.000000e+00 : f32
      %47 = vector.broadcast %cst_18 : f32 to vector<8x1xf32>
      %48 = arith.mulf %46, %47 : vector<8x1xf32>
      %cst_19 = arith.constant 9.99999996E-13 : f32
      %49 = vector.broadcast %cst_19 : f32 to vector<8x1xf32>
      %50 = arith.maximumf %48, %49 : vector<8x1xf32>
      %51 = tpu.reciprocal %50 {approx = true} : vector<8x1xf32> -> vector<8x1xf32>
      %52 = vector.broadcast %51 : vector<8x1xf32> to vector<8x128xf32>
      %53 = arith.mulf %44, %52 : vector<8x128xf32>
      %cst_20 = arith.constant dense<0.000000e+00> : vector<128xf32>
      %54 = vector.multi_reduction <add>, %53, %cst_20 [0] : vector<8x128xf32> to vector<128xf32>
      %55 = vector.shape_cast %54 : vector<128xf32> to vector<1x128xf32>
      %cst_21 = arith.constant 8.000000e+00 : f32
      %56 = vector.broadcast %cst_21 : f32 to vector<1x128xf32>
      %57 = arith.mulf %55, %56 : vector<1x128xf32>
      %cst_22 = arith.constant 9.99999996E-13 : f32
      %58 = vector.broadcast %cst_22 : f32 to vector<1x128xf32>
      %59 = arith.maximumf %57, %58 : vector<1x128xf32>
      %60 = tpu.reciprocal %59 {approx = true} : vector<1x128xf32> -> vector<1x128xf32>
      %61 = vector.broadcast %60 : vector<1x128xf32> to vector<8x128xf32>
      %62 = arith.mulf %53, %61 : vector<8x128xf32>
      %cst_23 = arith.constant dense<0.000000e+00> : vector<8xf32>
      %63 = vector.multi_reduction <add>, %62, %cst_23 [1] : vector<8x128xf32> to vector<8xf32>
      %64 = vector.shape_cast %63 : vector<8xf32> to vector<8x1xf32>
      %cst_24 = arith.constant 8.000000e+00 : f32
      %65 = vector.broadcast %cst_24 : f32 to vector<8x1xf32>
      %66 = arith.mulf %64, %65 : vector<8x1xf32>
      %cst_25 = arith.constant 9.99999996E-13 : f32
      %67 = vector.broadcast %cst_25 : f32 to vector<8x1xf32>
      %68 = arith.maximumf %66, %67 : vector<8x1xf32>
      %69 = tpu.reciprocal %68 {approx = true} : vector<8x1xf32> -> vector<8x1xf32>
      %70 = vector.broadcast %69 : vector<8x1xf32> to vector<8x128xf32>
      %71 = arith.mulf %62, %70 : vector<8x128xf32>
      %cst_26 = arith.constant dense<0.000000e+00> : vector<128xf32>
      %72 = vector.multi_reduction <add>, %71, %cst_26 [0] : vector<8x128xf32> to vector<128xf32>
      %73 = vector.shape_cast %72 : vector<128xf32> to vector<1x128xf32>
      %cst_27 = arith.constant 8.000000e+00 : f32
      %74 = vector.broadcast %cst_27 : f32 to vector<1x128xf32>
      %75 = arith.mulf %73, %74 : vector<1x128xf32>
      %cst_28 = arith.constant 9.99999996E-13 : f32
      %76 = vector.broadcast %cst_28 : f32 to vector<1x128xf32>
      %77 = arith.maximumf %75, %76 : vector<1x128xf32>
      %78 = tpu.reciprocal %77 {approx = true} : vector<1x128xf32> -> vector<1x128xf32>
      %79 = vector.broadcast %78 : vector<1x128xf32> to vector<8x128xf32>
      %80 = arith.mulf %71, %79 : vector<8x128xf32>
      %cst_29 = arith.constant dense<0.000000e+00> : vector<8xf32>
      %81 = vector.multi_reduction <add>, %80, %cst_29 [1] : vector<8x128xf32> to vector<8xf32>
      %82 = vector.shape_cast %81 : vector<8xf32> to vector<8x1xf32>
      %cst_30 = arith.constant 9.99999996E-13 : f32
      %83 = vector.broadcast %cst_30 : f32 to vector<8x1xf32>
      %84 = arith.maximumf %82, %83 : vector<8x1xf32>
      %85 = tpu.reciprocal %84 {approx = true} : vector<8x1xf32> -> vector<8x1xf32>
      %86 = vector.broadcast %85 : vector<8x1xf32> to vector<8x128xf32>
      %87 = arith.mulf %80, %86 : vector<8x128xf32>
      %c0_31 = arith.constant 0 : index
      %c0_32 = arith.constant 0 : index
      %88 = vector.load %arg3[%c0_31, %c0_32] : memref<8x128xf32, #tpu.memory_space<vmem>>, vector<8x128xf32>
      %89 = arith.mulf %88, %87 : vector<8x128xf32>
      %c0_33 = arith.constant 0 : index
      %c0_34 = arith.constant 0 : index
      %90 = vector.load %arg4[%c0_33, %c0_34] : memref<8x128xf32, #tpu.memory_space<vmem>>, vector<8x128xf32>
      tpu.vector_store %arg4[%c0_33, %c0_34], %89 {strides = array<i32>} : memref<8x128xf32, #tpu.memory_space<vmem>>, vector<8x128xf32>,
    } else {
    }
    return
  }
  func.func @transform_0(%arg0: i32) -> (i32, i32) {
    %c0_i32 = arith.constant 0 : i32
    %c0_i32_0 = arith.constant 0 : i32
    return %arg0, %c0_i32 : i32, i32
  }
  func.func @transform_1(%arg0: i32) -> (i32, i32) {
    %c0_i32 = arith.constant 0 : i32
    %c0_i32_0 = arith.constant 0 : i32
    %c0_i32_1 = arith.constant 0 : i32
    return %c0_i32, %c0_i32_0 : i32, i32
  }
  func.func @transform_2(%arg0: i32) -> (i32, i32) {
    %c0_i32 = arith.constant 0 : i32
    %c0_i32_0 = arith.constant 0 : i32
    %c0_i32_1 = arith.constant 0 : i32
    return %c0_i32, %c0_i32_0 : i32, i32
  }
  func.func @transform_3(%arg0: i32) -> (i32, i32) {
    %c0_i32 = arith.constant 0 : i32
    %c0_i32_0 = arith.constant 0 : i32
    %c0_i32_1 = arith.constant 0 : i32
    return %c0_i32, %c0_i32_0 : i32, i32
  }
}

</mosaic_0001>

<llo_original>
// kernel: tpu_custom_call.1
$region0: #{tpu_custom_call.1}
  #allocation0 [shape = 'u32[]', space=smem, size = 0x4, offset = 0x4, fixed_abs, tag = 'smem constant byte address 0x4 - core index']
  #allocation1 [shape = 'u32[144,128]{1,0:T(1,128)}', space=vmem, size = 0x12000, scoped, tag = 'internal scratch']
  %s0 = inlined_call_operand.hbm [shape: bf16[8,128], index: 0, kind: input, shape index: {}]
  %s1 = inlined_call_operand.hbm [shape: bf16[128,128], index: 1, kind: input, shape index: {}]
  %s2 = inlined_call_operand.hbm [shape: f32[8,128], index: 2, kind: input, shape index: {}]
  %s3 = inlined_call_operand.hbm [shape: f32[8,128], index: 3, kind: output, shape index: {}]
  %s4 = sld [smem:[#allocation0]]
  $region38: #{tpu_custom_call.1} parent=0
    _
  %s6 = ssub.s32 1, %s4
  %s7 = scalar_select 0, %s6, %s4
  $region1: #{tpu_custom_call.1} parent=0
    #allocation2 [shape = 'u8[2048]{0}', space=vmem, size = 0x800, scoped, tag = 'input window, operand 0, single buffered']
    #allocation3 [shape = 's32[1]{0}', space=sflag, size = 0x4, scoped, tag = 'scoped memory for tpu_custom_call.1']
    #allocation4 [shape = 's32[1]{0}', space=sflag, size = 0x4, scoped, tag = 'scoped memory for tpu_custom_call.1']
    #allocation5 [shape = 'u8[32768]{0}', space=vmem, size = 0x8000, scoped, tag = 'input window, operand 1, single buffered']
    #allocation6 [shape = 's32[1]{0}', space=sflag, size = 0x4, scoped, tag = 'scoped memory for tpu_custom_call.1']
    #allocation7 [shape = 'u8[4096]{0}', space=vmem, size = 0x1000, scoped, tag = 'input window, operand 2, single buffered']
    #allocation8 [shape = 'u8[4096]{0}', space=vmem, size = 0x1000, scoped, tag = 'output window, operand 0, single buffered']
    %8 = vsyncpa [#allocation3], 0
    %9 = vsyncpa [#allocation6], 0
    %10 = vsyncpa [#allocation4], 0
    // Predicated region
    $region2: #{tpu_custom_call.1} parent=1 // pred_check
      _
    $region3: #{tpu_custom_call.1} parent=1 // pred_check_branch
      %12 = sbr.rel (0) target = $region5
    $region4: #{tpu_custom_call.1} parent=1 // pred_region
      %s14 = ssub.s32 64, 64
      %15 = vsyncadd [#allocation3], %s14
      %s17 = sshll.u32 [#allocation2], 4
      %s18 = int_to_ptr.vmem [resolvable:$true] %s17
      %20 = dma.hbm_to_vmem [thread:$0]  %s0, 64, %s18, [#allocation3]
    $region5: #{tpu_custom_call.1} parent=1 // pred_fallthru
      _
    // Predicated region
    $region6: #{tpu_custom_call.1} parent=1 // pred_check
      _
    $region7: #{tpu_custom_call.1} parent=1 // pred_check_branch
      %22 = sbr.rel (0) target = $region9
    $region8: #{tpu_custom_call.1} parent=1 // pred_region
      %s24 = ssub.s32 1024, 1024
      %25 = vsyncadd [#allocation6], %s24
      %s26 = sshll.u32 [#allocation5], 4
      %s27 = int_to_ptr.vmem [resolvable:$true] %s26
      %32 = dma.hbm_to_vmem [thread:$0]  %s1, 1024, %s27, [#allocation6], 64, 64, 4
    $region9: #{tpu_custom_call.1} parent=1 // pred_fallthru
      _
    // Predicated region
    $region10: #{tpu_custom_call.1} parent=1 // pred_check
      _
    $region11: #{tpu_custom_call.1} parent=1 // pred_check_branch
      %34 = sbr.rel (0) target = $region13
    $region12: #{tpu_custom_call.1} parent=1 // pred_region
      %s36 = ssub.s32 128, 128
      %37 = vsyncadd [#allocation6], %s36
      %s39 = sshll.u32 [#allocation7], 4
      %s40 = int_to_ptr.vmem [resolvable:$true] %s39
      %42 = dma.hbm_to_vmem [thread:$0]  %s2, 128, %s40, [#allocation6]
    $region13: #{tpu_custom_call.1} parent=1 // pred_fallthru
      _
    // Predicated region
    $region14: #{tpu_custom_call.1} parent=1 // pred_check
      _
    $region15: #{tpu_custom_call.1} parent=1 // pred_check_branch
      %44 = sbr.rel (0) target = $region17
    $region16: #{tpu_custom_call.1} parent=1 // pred_region
      %45 = dma.done [#allocation3], 64
    $region17: #{tpu_custom_call.1} parent=1 // pred_fallthru
      _
    // Predicated region
    $region18: #{tpu_custom_call.1} parent=1 // pred_check
      _
    $region19: #{tpu_custom_call.1} parent=1 // pred_check_branch
      %47 = sbr.rel (0) target = $region21
    $region20: #{tpu_custom_call.1} parent=1 // pred_region
      %48 = dma.done [#allocation6], 1024
    $region21: #{tpu_custom_call.1} parent=1 // pred_fallthru
      _
    // Predicated region
    $region22: #{tpu_custom_call.1} parent=1 // pred_check
      _
    $region23: #{tpu_custom_call.1} parent=1 // pred_check_branch
      %50 = sbr.rel (0) target = $region25
    $region24: #{tpu_custom_call.1} parent=1 // pred_region
      %51 = dma.done [#allocation6], 128
    $region25: #{tpu_custom_call.1} parent=1 // pred_fallthru
      _
    %v53 = vld [vmem:[#allocation2] sm:$0xf]
    %v54 = vld [vmem:[#allocation5] sm:$0xf]
    %v55 = vld [vmem:[#allocation5 + $0x4] sm:$0xf]
    %v56 = vld [vmem:[#allocation5 + $0x8] sm:$0xf]
    %v57 = vld [vmem:[#allocation5 + $0xc] sm:$0xf]
    %v58 = vld [vmem:[#allocation5 + $0x10] sm:$0xf]
    %v59 = vld [vmem:[#allocation5 + $0x14] sm:$0xf]
    %v60 = vld [vmem:[#allocation5 + $0x18] sm:$0xf]
    %v61 = vld [vmem:[#allocation5 + $0x1c] sm:$0xf]
    %v62 = vld [vmem:[#allocation5 + $0x20] sm:$0xf]
    %v63 = vld [vmem:[#allocation5 + $0x24] sm:$0xf]
    %v64 = vld [vmem:[#allocation5 + $0x28] sm:$0xf]
    %v65 = vld [vmem:[#allocation5 + $0x2c] sm:$0xf]
    %v66 = vld [vmem:[#allocation5 + $0x30] sm:$0xf]
    %v67 = vld [vmem:[#allocation5 + $0x34] sm:$0xf]
    %v68 = vld [vmem:[#allocation5 + $0x38] sm:$0xf]
    %v69 = vld [vmem:[#allocation5 + $0x3c] sm:$0xf]
    %v86 = vunpack.c.l.b16 %v54
    %v87 = vunpack.c.l.b16 %v55
    %v88 = vunpack.c.l.b16 %v56
    %v89 = vunpack.c.l.b16 %v57
    %v90 = vunpack.c.l.b16 %v58
    %v91 = vunpack.c.l.b16 %v59
    %v92 = vunpack.c.l.b16 %v60
    %v93 = vunpack.c.l.b16 %v61
    %v94 = vunpack.c.l.b16 %v62
    %v95 = vunpack.c.l.b16 %v63
    %v96 = vunpack.c.l.b16 %v64
    %v97 = vunpack.c.l.b16 %v65
    %v98 = vunpack.c.l.b16 %v66
    %v99 = vunpack.c.l.b16 %v67
    %v100 = vunpack.c.l.b16 %v68
    %v101 = vunpack.c.l.b16 %v69
    %v102 = vpack.c.b16 %v87, %v86
    %v103 = vpack.c.b16 %v89, %v88
    %v104 = vpack.c.b16 %v91, %v90
    %v105 = vpack.c.b16 %v93, %v92
    %v106 = vpack.c.b16 %v95, %v94
    %v107 = vpack.c.b16 %v97, %v96
    %v108 = vpack.c.b16 %v99, %v98
    %v109 = vpack.c.b16 %v101, %v100
    %118 = vmatprep.subr.bf16.mxu0 0
    %119 = vmatpush1.bf16.xpose.msra.mxu0 %v102
    %120 = vmatprep.subr.bf16.mxu0 0
    %121 = vmatpush1.bf16.xpose.msra.mxu0 %v103
    %122 = vmatprep.subr.bf16.mxu0 0
    %123 = vmatpush1.bf16.xpose.msra.mxu0 %v104
    %124 = vmatprep.subr.bf16.mxu0 0
    %125 = vmatpush1.bf16.xpose.msra.mxu0 %v105
    %126 = vmatprep.subr.bf16.mxu0 0
    %127 = vmatpush1.bf16.xpose.msra.mxu0 %v106
    %128 = vmatprep.subr.bf16.mxu0 0
    %129 = vmatpush1.bf16.xpose.msra.mxu0 %v107
    %130 = vmatprep.subr.bf16.mxu0 0
    %131 = vmatpush1.bf16.xpose.msra.mxu0 %v108
    %132 = vmatprep.subr.bf16.mxu0 0
    %133 = vmatpush1.bf16.xpose.msra.mxu0 %v109
    %134 = vmatprep.subr.bf16.mxu0 0
    %135 = vmatpush1.bf16.xpose.msra.mxu0 0
    %136 = vmatprep.subr.bf16.mxu0 0
    %137 = vmatpush1.bf16.xpose.msra.mxu0 0
    %138 = vmatprep.subr.bf16.mxu0 0
    %139 = vmatpush1.bf16.xpose.msra.mxu0 0
    %140 = vmatprep.subr.bf16.mxu0 0
    %141 = vmatpush1.bf16.xpose.msra.mxu0 0
    %142 = vmatprep.subr.bf16.mxu0 0
    %143 = vmatpush1.bf16.xpose.msra.mxu0 0
    %144 = vmatprep.subr.bf16.mxu0 0
    %145 = vmatpush1.bf16.xpose.msra.mxu0 0
    %146 = vmatprep.subr.bf16.mxu0 0
    %147 = vmatpush1.bf16.xpose.msra.mxu0 0
    %148 = vmatprep.subr.bf16.mxu0 0
    %149 = vmatpush1.bf16.xpose.msra.mxu0 0
    %150 = vmatprep.mubr.bf16.mxu0 0
    %151 = vmatmul.mubr.bf16.gmra.mrb[0].mxu0 %v53
    %v152 = vpop.f32.mrb[0].mxu0
    %v153 = vadd.f32 0.0, %v152
    %v154 = vpop.f32.mrb[0].mxu0
    %v155 = vpop.f32.mrb[0].mxu0
    %v156 = vpop.f32.mrb[0].mxu0
    %157 = vdwg.mxu0
    %s158 = smul.u32 0, 8
    %v159 = vlaneseq
    %v160 = vshrl.u32 %v159, 7
    %v161 = vstv %s158
    %v162 = vadd.s32 %v161, %v160
    %v163 = vlaneseq
    %v164 = vand.u32 %v163, 127
    %vm165 = vcmp.lt.s32.totalorder %v162, 8
    %vm166 = vcmp.lt.s32.totalorder %v164, 8
    %vm167 = vmand %vm165, %vm166
    %v168 = vsel %vm167, 1, 0
    %v169 = vcvt.s32.f32 %v168
    %v170 = vmul.f32 %v153, 20.0
    %v171 = vmul.f32 %v170, 1.442695
    %v172 = vpow.pop %v171
    %v173 = vmul.f32 %v172, %v169
    %s174 = scalar_lea.vmem [#allocation8], %s158
    %175 = vst [vmem:[%s174] sm:$0xff] %v173
    %p176 = scmp.eq.s32.totalorder 0, 0
    // Predicated region
    $region26: #{tpu_custom_call.1} parent=1 // pred_check
      %p177 = pneg %p176
    $region27: #{tpu_custom_call.1} parent=1 // pred_check_branch
      %179 = sbr.rel (%p177) target = $region29
    $region28: #{tpu_custom_call.1} parent=1 // pred_region
      %v180 = vld [vmem:[#allocation8] sm:$0xff]
      %181 = vadd.xlane.f32.xlu0 %v180
      %v182 = vpop.xlane.xlu0 %181
      %v183 = vrot.slane %v182, 4
      %v184 = vadd.f32 %v182, %v183
      %v185 = vrot.slane %v184, 2
      %v186 = vadd.f32 %v184, %v185
      %v187 = vrot.slane %v186, 1
      %v188 = vadd.f32 %v186, %v187
      %v189 = vmax.f32 %v188, 1e-30
      %v190 = vrcp.pop %v189
      %v191 = vmul.f32 %v180, %v190
      %v192 = vrot.slane %v191, 4
      %v193 = vadd.f32 %v191, %v192
      %v194 = vrot.slane %v193, 2
      %v195 = vadd.f32 %v193, %v194
      %v196 = vrot.slane %v195, 1
      %v197 = vadd.f32 %v195, %v196
      %v198 = vmul.f32 %v197, 8.0
      %v199 = vmax.f32 %v198, 1e-12
      %v200 = vrcp.pop %v199
      %v201 = vmul.f32 %v191, %v200
      %202 = vadd.xlane.f32.xlu0 %v201
      %v203 = vpop.xlane.xlu0 %202
      %v204 = vmul.f32 %v203, 8.0
      %v205 = vmax.f32 %v204, 1e-12
      %v206 = vrcp.pop %v205
      %v207 = vmul.f32 %v201, %v206
      %v208 = vrot.slane %v207, 4
      %v209 = vadd.f32 %v207, %v208
      %v210 = vrot.slane %v209, 2
      %v211 = vadd.f32 %v209, %v210
      %v212 = vrot.slane %v211, 1
      %v213 = vadd.f32 %v211, %v212
      %v214 = vmul.f32 %v213, 8.0
      %v215 = vmax.f32 %v214, 1e-12
      %v216 = vrcp.pop %v215
      %v217 = vmul.f32 %v207, %v216
      %218 = vadd.xlane.f32.xlu0 %v217
      %v219 = vpop.xlane.xlu0 %218
      %v220 = vmul.f32 %v219, 8.0
      %v221 = vmax.f32 %v220, 1e-12
      %v222 = vrcp.pop %v221
      %v223 = vmul.f32 %v217, %v222
      %v224 = vrot.slane %v223, 4
      %v225 = vadd.f32 %v223, %v224
      %v226 = vrot.slane %v225, 2
      %v227 = vadd.f32 %v225, %v226
      %v228 = vrot.slane %v227, 1
      %v229 = vadd.f32 %v227, %v228
      %v230 = vmul.f32 %v229, 8.0
      %v231 = vmax.f32 %v230, 1e-12
      %v232 = vrcp.pop %v231
      %v233 = vmul.f32 %v223, %v232
      %234 = vadd.xlane.f32.xlu0 %v233
      %v235 = vpop.xlane.xlu0 %234
      %v236 = vmax.f32 %v235, 1e-12
      %v237 = vrcp.pop %v236
      %v238 = vmul.f32 %v233, %v237
      %v239 = vld [vmem:[#allocation7] sm:$0xff]
      %v240 = vmul.f32 %v239, %v238
      %241 = vst [vmem:[#allocation8] sm:$0xff] %v240
    $region29: #{tpu_custom_call.1} parent=1 // pred_fallthru
      _
    // Predicated region
    $region30: #{tpu_custom_call.1} parent=1 // pred_check
      _
    $region31: #{tpu_custom_call.1} parent=1 // pred_check_branch
      %243 = sbr.rel (0) target = $region33
    $region32: #{tpu_custom_call.1} parent=1 // pred_region
      %s245 = ssub.s32 128, 128
      %246 = vsyncadd [#allocation4], %s245
      %s248 = sshll.u32 [#allocation8], 4
      %s249 = int_to_ptr.vmem [resolvable:$true] %s248
      %251 = dma.vmem_to_hbm [thread:$0]  %s249, 128, %s3, [#allocation4]
    $region33: #{tpu_custom_call.1} parent=1 // pred_fallthru
      _
    // Predicated region
    $region34: #{tpu_custom_call.1} parent=1 // pred_check
      _
    $region35: #{tpu_custom_call.1} parent=1 // pred_check_branch
      %253 = sbr.rel (0) target = $region37
    $region36: #{tpu_custom_call.1} parent=1 // pred_region
      %254 = dma.done [#allocation4], 128
    $region37: #{tpu_custom_call.1} parent=1 // pred_fallthru
      _
    %255 = vsyncpa [#allocation3], 1
    %256 = vsyncpa [#allocation6], 1
    %257 = vsyncpa [#allocation4], 1

</llo_original>
